<compile_context>
chip_gen: v5e
topology: v5e:2x2
jax: 0.10.0
libtpu: 0.0.40
codegen_flags: <defaults>
</compile_context>

<pallas_src>
import functools
import math

import jax
import jax.numpy as jnp
from jax.experimental import pallas as pl
from jax.experimental.pallas import tpu as pltpu

_LANE = 128
_MIN_TILE = 16  # bf16-friendly sublane multiple


def _round_up(x, m):
    return ((x + m - 1) // m) * m


# ----------------------------------------------------------------------------
# Kernel
# ----------------------------------------------------------------------------
def _make_densenet_kernel(num_hidden: int, activation, compute_dtype):
    """Full DenseNet stack for one batch tile.

    Ref order:
      tx_ref,                                  # (TB, dim_in) f32
      (w_0, b_0), ..., (w_{nh-1}, b_{nh-1}),   # real-shape bf16 weights, f32 biases
      w_out, b_out,                            # N padded to 128 (lane-dense store)
      out_ref                                  # (TB, dim_out_pad) f32
    """

    def kernel(*refs):
        tx_ref = refs[0]
        out_ref = refs[-1]

        # Feature block 0: [t, x], cast to the matmul input dtype exactly once.
        feat = tx_ref[...].astype(compute_dtype)          # (TB, dim_in)

        idx = 1
        for _ in range(num_hidden):
            w = refs[idx][...]                             # (K_real, n) compute_dtype
            b = refs[idx + 1][...]                         # (1, n) f32
            idx += 2
            z = jnp.dot(feat, w, preferred_element_type=jnp.float32) + b
            h = activation(z)                              # f32 VPU/EUP
            # Tightly pack the new block onto the slab (cast once, written once).
            feat = jnp.concatenate([feat, h.astype(compute_dtype)], axis=-1)

        # Output layer over the full (real-width) concatenated feature slab.
        w = refs[idx][...]                                 # (K_total, dim_out_pad)
        b = refs[idx + 1][...]                             # (1, dim_out_pad) f32
        out = jnp.dot(feat, w, preferred_element_type=jnp.float32) + b
        out_ref[...] = out.astype(out_ref.dtype)           # lane-dense store

    return kernel


# ----------------------------------------------------------------------------
# Wrapper (parameter plumbing + pallas_call)
# ----------------------------------------------------------------------------
class DenseNetPallas:
    """JAX/Pallas port of DenseNet(dim, arch, activation)."""

    def __init__(self, dim, arch, activation=jnp.tanh, dim_out=None, key=None,
                 param_dtype=jnp.bfloat16, batch_tile=256):
        self.dim = dim
        self.dim_in = dim + 1
        self.dim_out = dim_out or dim
        self.nn_dims = [self.dim_in] + list(arch)
        self.activation = activation
        self.num_hidden = len(self.nn_dims) - 1
        self.compute_dtype = param_dtype
        self.batch_tile = max(_MIN_TILE, _round_up(int(batch_tile), _MIN_TILE))

        if key is None:
            key = jax.random.PRNGKey(0)

        # Deterministic init mimicking nn.Linear's U(-1/sqrt(fan_in), 1/sqrt(fan_in)).
        # Weights stored (in_features, out_features): y = x @ W + b.
        self.hidden_ws = []   # f32 master weights (fan_in_i, out_i)
        self.hidden_bs = []   # f32 (1, out_i)
        for i in range(self.num_hidden):
            fan_in = sum(self.nn_dims[: i + 1])
            fan_out = self.nn_dims[i + 1]
            key, kw, kb = jax.random.split(key, 3)
            bound = 1.0 / math.sqrt(fan_in)
            w = jax.random.uniform(kw, (fan_in, fan_out), jnp.float32, -bound, bound)
            b = jax.random.uniform(kb, (1, fan_out), jnp.float32, -bound, bound)
            self.hidden_ws.append(w)
            self.hidden_bs.append(b)

        fan_in = sum(self.nn_dims)
        key, kw, kb = jax.random.split(key, 3)
        bound = 1.0 / math.sqrt(fan_in)
        self.out_w = jax.random.uniform(kw, (fan_in, self.dim_out), jnp.float32, -bound, bound)
        self.out_b = jax.random.uniform(kb, (1, self.dim_out), jnp.float32, -bound, bound)

        # ---- tightly packed feature layout ----
        self.cum = [0]
        for d in self.nn_dims:
            self.cum.append(self.cum[-1] + d)              # real cumulative widths
        self.dim_out_pad = _round_up(self.dim_out, _LANE)  # lane-dense output only

        # Kernel-side parameters: bf16 weights at their REAL shapes; only the
        # output layer's N dim is zero-padded (to 128) for a lane-dense store.
        self.hidden_ws_c = [w.astype(self.compute_dtype) for w in self.hidden_ws]
        self.hidden_bs_c = list(self.hidden_bs)            # biases stay f32
        out_w_pad = jnp.zeros((fan_in, self.dim_out_pad), jnp.float32)
        out_w_pad = out_w_pad.at[:, : self.dim_out].set(self.out_w)
        self.out_w_c = out_w_pad.astype(self.compute_dtype)
        out_b_pad = jnp.zeros((1, self.dim_out_pad), jnp.float32)
        self.out_b_c = out_b_pad.at[:, : self.dim_out].set(self.out_b)

    # ---- glue: replicate Model.flatten ----
    def _flatten(self, t, x):
        B = x.shape[0]
        if t.ndim == 0 or t.shape[0] == 1:
            t = jnp.broadcast_to(jnp.reshape(t, (-1,))[:1], (B,))
        if t.ndim == 1:
            t = t[:, None]
        assert x.shape[-1] == self.dim
        assert t.shape == (B, 1)
        return jnp.concatenate([t, x], axis=1)

    def _pick_batch_tile(self, B):
        TB = self.batch_tile
        if B < TB:
            # Aim for >=2 grid steps when possible so the "parallel" batch axis
            # can shard across both TensorCores on v7x (no-op on v5e/v6e).
            TB = max(_MIN_TILE, _round_up((B + 1) // 2, _MIN_TILE))
            TB = min(TB, _round_up(B, _MIN_TILE))
        return TB

    @functools.partial(jax.jit, static_argnums=0)
    def __call__(self, t, x):
        tx = self._flatten(t, x).astype(jnp.float32)        # (B, dim_in)
        B = tx.shape[0]

        TB = self._pick_batch_tile(B)
        B_pad = _round_up(B, TB)
        grid = (B_pad // TB,)
        if B_pad > B:
            tx = jnp.pad(tx, ((0, B_pad - B), (0, 0)))       # batch pad only

        operands = [tx]
        in_specs = [pl.BlockSpec((TB, self.dim_in), lambda i: (i, 0))]

        def full_spec(arr):
            # Grid-invariant full-array block (weights/biases).
            return pl.BlockSpec(arr.shape, lambda i: (0,) * arr.ndim)

        for i in range(self.num_hidden):
            operands += [self.hidden_ws_c[i], self.hidden_bs_c[i]]
            in_specs += [full_spec(self.hidden_ws_c[i]),
                         full_spec(self.hidden_bs_c[i])]
        operands += [self.out_w_c, self.out_b_c]
        in_specs += [full_spec(self.out_w_c), full_spec(self.out_b_c)]

        kernel = _make_densenet_kernel(self.num_hidden, self.activation,
                                       self.compute_dtype)

        # Advisory cost estimate from the REAL (packed) dims.
        flops = 0
        for i in range(self.num_hidden):
            flops += 2 * B_pad * self.cum[i + 1] * self.nn_dims[i + 1]
        flops += 2 * B_pad * self.cum[-1] * self.dim_out
        transcendentals = B_pad * sum(self.nn_dims[1:])
        bytes_accessed = int(
            tx.size * tx.dtype.itemsize
            + sum(op.size * op.dtype.itemsize for op in operands[1:])
            + B_pad * self.dim_out * 4)

        out_pad = pl.pallas_call(
            kernel,
            out_shape=jax.ShapeDtypeStruct((B_pad, self.dim_out_pad), jnp.float32),
            grid_spec=pltpu.PrefetchScalarGridSpec(
                num_scalar_prefetch=0,
                grid=grid,
                in_specs=in_specs,
                out_specs=pl.BlockSpec((TB, self.dim_out_pad), lambda i: (i, 0)),
            ),
            compiler_params=pltpu.CompilerParams(
                dimension_semantics=("parallel",),
                vmem_limit_bytes=32 * 1024 * 1024,
            ),
            cost_estimate=pl.CostEstimate(
                flops=flops,
                transcendentals=transcendentals,
                bytes_accessed=bytes_accessed,
            ),
        )(*operands)

        # Strip batch/lane padding in plain JAX.
        return out_pad[:B, : self.dim_out]

    # ---- pure-JAX f32 reference (mirrors the PyTorch forward exactly) ----
    def reference(self, t, x):
        tensor = self._flatten(t, x).astype(jnp.float32)
        for i in range(self.num_hidden):
            h = self.activation(tensor @ self.hidden_ws[i] + self.hidden_bs[i])
            tensor = jnp.concatenate([tensor, h], axis=1)
        return tensor @ self.out_w + self.out_b

    # ---- reference mirroring the kernel's numerics (bf16 MXU in, f32 accum) ----
    def reference_compute(self, t, x):
        cd = self.compute_dtype
        feat = self._flatten(t, x).astype(jnp.float32).astype(cd)
        for i in range(self.num_hidden):
            z = jnp.dot(feat, self.hidden_ws[i].astype(cd),
                        preferred_element_type=jnp.float32) + self.hidden_bs[i]
            h = self.activation(z)
            feat = jnp.concatenate([feat, h.astype(cd)], axis=1)
        out = jnp.dot(feat, self.out_w.astype(cd),
                      preferred_element_type=jnp.float32)
        return out + self.out_b


# ----------------------------------------------------------------------------
# Main
# ----------------------------------------------------------------------------
if __name__ == "__main__":
    key = jax.random.PRNGKey(0)
    k_t, k_x, k_p = jax.random.split(key, 3)

    dim = 4
    batch = 16
    arch = [32, 32]

    model = DenseNetPallas(dim=dim, arch=arch, activation=jnp.tanh, key=k_p,
                           param_dtype=jnp.bfloat16, batch_tile=256)

    t = jax.random.uniform(k_t, (batch,), jnp.float32)
    x = jax.random.normal(k_x, (batch, dim), jnp.float32)

    out = jax.block_until_ready(model(t, x))
    assert out.shape == (batch, dim)

    # (a) Tight check against a reference with identical numerics (structure).
    ref_compute = model.reference_compute(t, x)
    err_c = float(jnp.max(jnp.abs(out - ref_compute)))
    assert jnp.allclose(out, ref_compute, atol=2e-3, rtol=2e-3), (
        f"kernel vs bf16-path reference: max abs err {err_c}")

    # (b) Loose check against the full-f32 reference (bf16 MXU-input precision).
    ref_f32 = model.reference(t, x)
    err_f = float(jnp.max(jnp.abs(out - ref_f32)))
    assert jnp.allclose(out, ref_f32, atol=5e-2, rtol=5e-2), (
        f"kernel vs f32 reference: max abs err {err_f}")

    print("KERNEL_OK")
</pallas_src>

<mosaic_0001>
module attributes {stable_mosaic.version = 11 : i64} {
  func.func @kernel(%arg0: i32, %arg1: memref<16x5xf32, #tpu.memory_space<vmem>>, %arg2: memref<5x32xbf16, #tpu.memory_space<vmem>>, %arg3: memref<1x32xf32, #tpu.memory_space<vmem>>, %arg4: memref<37x32xbf16, #tpu.memory_space<vmem>>, %arg5: memref<1x32xf32, #tpu.memory_space<vmem>>, %arg6: memref<69x128xbf16, #tpu.memory_space<vmem>>, %arg7: memref<1x128xf32, #tpu.memory_space<vmem>>, %arg8: memref<16x128xf32, #tpu.memory_space<vmem>>) attributes {dimension_semantics = [#tpu.dimension_semantics<parallel>], iteration_bounds = array<i64: 1>, scalar_prefetch = 0 : i64, scratch_operands = 0 : i64, tpu.core_type = #tpu.core_type<tc>, window_params = [{transform_indices = @transform_0, window_bounds = array<i64: 16, 5>}, {pipeline_mode = #tpu.pipeline_mode<synchronous>, transform_indices = @transform_1, window_bounds = array<i64: 5, 32>}, {pipeline_mode = #tpu.pipeline_mode<synchronous>, transform_indices = @transform_2, window_bounds = array<i64: 1, 32>}, {pipeline_mode = #tpu.pipeline_mode<synchronous>, transform_indices = @transform_3, window_bounds = array<i64: 37, 32>}, {pipeline_mode = #tpu.pipeline_mode<synchronous>, transform_indices = @transform_4, window_bounds = array<i64: 1, 32>}, {pipeline_mode = #tpu.pipeline_mode<synchronous>, transform_indices = @transform_5, window_bounds = array<i64: 69, 128>}, {pipeline_mode = #tpu.pipeline_mode<synchronous>, transform_indices = @transform_6, window_bounds = array<i64: 1, 128>}, {transform_indices = @transform_7, window_bounds = array<i64: 16, 128>}]} {
    %c0 = arith.constant 0 : index
    %c0_0 = arith.constant 0 : index
    %0 = vector.load %arg1[%c0, %c0_0] : memref<16x5xf32, #tpu.memory_space<vmem>>, vector<16x5xf32>
    %1 = arith.truncf %0 : vector<16x5xf32> to vector<16x5xbf16>
    %c0_1 = arith.constant 0 : index
    %c0_2 = arith.constant 0 : index
    %2 = vector.load %arg2[%c0_1, %c0_2] : memref<5x32xbf16, #tpu.memory_space<vmem>>, vector<5x32xbf16>
    %c0_3 = arith.constant 0 : index
    %c0_4 = arith.constant 0 : index
    %3 = vector.load %arg3[%c0_3, %c0_4] : memref<1x32xf32, #tpu.memory_space<vmem>>, vector<1x32xf32>
    %cst = arith.constant dense<0.000000e+00> : vector<16x32xf32>
    %4 = tpu.matmul %1, %2, %cst {dimension_numbers = #tpu.dot_dimension_numbers<[1], [0], [0], [1], [0, 0, 1, 1], [], []>} : vector<16x5xbf16>, vector<5x32xbf16>, vector<16x32xf32> -> vector<16x32xf32>
    %5 = vector.broadcast %3 : vector<1x32xf32> to vector<16x32xf32>
    %6 = arith.addf %4, %5 : vector<16x32xf32>
    %7 = math.tanh %6 : vector<16x32xf32>
    %8 = arith.truncf %7 : vector<16x32xf32> to vector<16x32xbf16>
    %9 = tpu.concatenate %1, %8 in 1 : vector<16x5xbf16>, vector<16x32xbf16> -> vector<16x37xbf16>
    %c0_5 = arith.constant 0 : index
    %c0_6 = arith.constant 0 : index
    %10 = vector.load %arg4[%c0_5, %c0_6] : memref<37x32xbf16, #tpu.memory_space<vmem>>, vector<37x32xbf16>
    %c0_7 = arith.constant 0 : index
    %c0_8 = arith.constant 0 : index
    %11 = vector.load %arg5[%c0_7, %c0_8] : memref<1x32xf32, #tpu.memory_space<vmem>>, vector<1x32xf32>
    %cst_9 = arith.constant dense<0.000000e+00> : vector<16x32xf32>
    %12 = tpu.matmul %9, %10, %cst_9 {dimension_numbers = #tpu.dot_dimension_numbers<[1], [0], [0], [1], [0, 0, 1, 1], [], []>} : vector<16x37xbf16>, vector<37x32xbf16>, vector<16x32xf32> -> vector<16x32xf32>
    %13 = vector.broadcast %11 : vector<1x32xf32> to vector<16x32xf32>
    %14 = arith.addf %12, %13 : vector<16x32xf32>
    %15 = math.tanh %14 : vector<16x32xf32>
    %16 = arith.truncf %15 : vector<16x32xf32> to vector<16x32xbf16>
    %17 = tpu.concatenate %9, %16 in 1 : vector<16x37xbf16>, vector<16x32xbf16> -> vector<16x69xbf16>
    %c0_10 = arith.constant 0 : index
    %c0_11 = arith.constant 0 : index
    %18 = vector.load %arg6[%c0_10, %c0_11] : memref<69x128xbf16, #tpu.memory_space<vmem>>, vector<69x128xbf16>
    %c0_12 = arith.constant 0 : index
    %c0_13 = arith.constant 0 : index
    %19 = vector.load %arg7[%c0_12, %c0_13] : memref<1x128xf32, #tpu.memory_space<vmem>>, vector<1x128xf32>
    %cst_14 = arith.constant dense<0.000000e+00> : vector<16x128xf32>
    %20 = tpu.matmul %17, %18, %cst_14 {dimension_numbers = #tpu.dot_dimension_numbers<[1], [0], [0], [1], [0, 0, 1, 1], [], []>} : vector<16x69xbf16>, vector<69x128xbf16>, vector<16x128xf32> -> vector<16x128xf32>
    %21 = vector.broadcast %19 : vector<1x128xf32> to vector<16x128xf32>
    %22 = arith.addf %20, %21 : vector<16x128xf32>
    %c0_15 = arith.constant 0 : index
    %c0_16 = arith.constant 0 : index
    %23 = vector.load %arg8[%c0_15, %c0_16] : memref<16x128xf32, #tpu.memory_space<vmem>>, vector<16x128xf32>
    tpu.vector_store %arg8[%c0_15, %c0_16], %22 {strides = array<i32>} : memref<16x128xf32, #tpu.memory_space<vmem>>, vector<16x128xf32>,
    return
  }
  func.func @transform_0(%arg0: i32) -> (i32, i32) {
    %c0_i32 = arith.constant 0 : i32
    %c0_i32_0 = arith.constant 0 : i32
    return %arg0, %c0_i32 : i32, i32
  }
  func.func @transform_1(%arg0: i32) -> (i32, i32) {
    %c0_i32 = arith.constant 0 : i32
    %c0_i32_0 = arith.constant 0 : i32
    %c0_i32_1 = arith.constant 0 : i32
    return %c0_i32, %c0_i32_0 : i32, i32
  }
  func.func @transform_2(%arg0: i32) -> (i32, i32) {
    %c0_i32 = arith.constant 0 : i32
    %c0_i32_0 = arith.constant 0 : i32
    %c0_i32_1 = arith.constant 0 : i32
    return %c0_i32, %c0_i32_0 : i32, i32
  }
  func.func @transform_3(%arg0: i32) -> (i32, i32) {
    %c0_i32 = arith.constant 0 : i32
    %c0_i32_0 = arith.constant 0 : i32
    %c0_i32_1 = arith.constant 0 : i32
    return %c0_i32, %c0_i32_0 : i32, i32
  }
  func.func @transform_4(%arg0: i32) -> (i32, i32) {
    %c0_i32 = arith.constant 0 : i32
    %c0_i32_0 = arith.constant 0 : i32
    %c0_i32_1 = arith.constant 0 : i32
    return %c0_i32, %c0_i32_0 : i32, i32
  }
  func.func @transform_5(%arg0: i32) -> (i32, i32) {
    %c0_i32 = arith.constant 0 : i32
    %c0_i32_0 = arith.constant 0 : i32
    %c0_i32_1 = arith.constant 0 : i32
    return %c0_i32, %c0_i32_0 : i32, i32
  }
  func.func @transform_6(%arg0: i32) -> (i32, i32) {
    %c0_i32 = arith.constant 0 : i32
    %c0_i32_0 = arith.constant 0 : i32
    %c0_i32_1 = arith.constant 0 : i32
    return %c0_i32, %c0_i32_0 : i32, i32
  }
  func.func @transform_7(%arg0: i32) -> (i32, i32) {
    %c0_i32 = arith.constant 0 : i32
    %c0_i32_0 = arith.constant 0 : i32
    return %arg0, %c0_i32 : i32, i32
  }
}

</mosaic_0001>

<llo_original>
// kernel: a_call__.1
$region0: #{a_call__.1}
  #allocation0 [shape = 'u32[]', space=smem, size = 0x4, offset = 0x4, fixed_abs, tag = 'smem constant byte address 0x4 - core index']
  #allocation1 [shape = 'u32[72,128]{1,0:T(1,128)}', space=vmem, size = 0x9000, scoped, tag = 'internal scratch']
  %s0 = inlined_call_operand.vmem [shape: f32[16,5], index: 0, kind: input, shape index: {}]
  %s1 = inlined_call_operand.vmem [shape: bf16[5,32], index: 1, kind: input, shape index: {}]
  %s2 = inlined_call_operand.vmem [shape: f32[1,32], index: 2, kind: input, shape index: {}]
  %s3 = inlined_call_operand.vmem [shape: bf16[37,32], index: 3, kind: input, shape index: {}]
  %s4 = inlined_call_operand.vmem [shape: f32[1,32], index: 4, kind: input, shape index: {}]
  %s5 = inlined_call_operand.vmem [shape: bf16[69,128], index: 5, kind: input, shape index: {}]
  %s6 = inlined_call_operand.vmem [shape: f32[1,128], index: 6, kind: input, shape index: {}]
  %s7 = inlined_call_operand.vmem [shape: f32[16,128], index: 7, kind: output, shape index: {}]
  %s8 = sld [smem:[#allocation0]]
  $region38: #{a_call__.1} parent=0
    _
  %s10 = ssub.s32 1, %s8
  %s11 = scalar_select 0, %s10, %s8
  // Predicated region
  $region2: #{a_call__.1} parent=0 // pred_check
    _
  $region3: #{a_call__.1} parent=0 // pred_check_branch
    %13 = sbr.rel (0) target = $region5
  $region4: #{a_call__.1} parent=0 // pred_region
    _
  $region5: #{a_call__.1} parent=0 // pred_fallthru
    _
  // Predicated region
  $region6: #{a_call__.1} parent=0 // pred_check
    _
  $region7: #{a_call__.1} parent=0 // pred_check_branch
    %15 = sbr.rel (0) target = $region9
  $region8: #{a_call__.1} parent=0 // pred_region
    _
  $region9: #{a_call__.1} parent=0 // pred_fallthru
    _
  // Predicated region
  $region10: #{a_call__.1} parent=0 // pred_check
    _
  $region11: #{a_call__.1} parent=0 // pred_check_branch
    %17 = sbr.rel (0) target = $region13
  $region12: #{a_call__.1} parent=0 // pred_region
    _
  $region13: #{a_call__.1} parent=0 // pred_fallthru
    _
  // Predicated region
  $region14: #{a_call__.1} parent=0 // pred_check
    _
  $region15: #{a_call__.1} parent=0 // pred_check_branch
    %19 = sbr.rel (0) target = $region17
  $region16: #{a_call__.1} parent=0 // pred_region
    _
  $region17: #{a_call__.1} parent=0 // pred_fallthru
    _
  // Predicated region
  $region18: #{a_call__.1} parent=0 // pred_check
    _
  $region19: #{a_call__.1} parent=0 // pred_check_branch
    %21 = sbr.rel (0) target = $region21
  $region20: #{a_call__.1} parent=0 // pred_region
    _
  $region21: #{a_call__.1} parent=0 // pred_fallthru
    _
  // Predicated region
  $region22: #{a_call__.1} parent=0 // pred_check
    _
  $region23: #{a_call__.1} parent=0 // pred_check_branch
    %23 = sbr.rel (0) target = $region25
  $region24: #{a_call__.1} parent=0 // pred_region
    _
  $region25: #{a_call__.1} parent=0 // pred_fallthru
    _
  // Predicated region
  $region26: #{a_call__.1} parent=0 // pred_check
    _
  $region27: #{a_call__.1} parent=0 // pred_check_branch
    %25 = sbr.rel (0) target = $region29
  $region28: #{a_call__.1} parent=0 // pred_region
    _
  $region29: #{a_call__.1} parent=0 // pred_fallthru
    _
  %v27 = vld [vmem:[%s0] sm:$0xff]
  %v28 = vld [vmem:[%s0 + $0x8] sm:$0xff]
  %v29 = vpack.c.bf16 %v27, %v27
  %v30 = vpack.c.bf16 %v28, %v28
  %v31 = vld [vmem:[%s1] sm:$0x7]
  %v32 = vld [vmem:[%s2] sm:$0x1]
  %v34 = vperm.slane %v32, 0
  %v38 = vunpack.c.l.b16 %v29
  %v39 = vunpack.c.l.b16 %v30
  %v40 = vpack.c.b16 %v39, %v38
  %vm41 = vcmask 39936
  %v43 = vsel %vm41, %v40, 0
  %vm45 = vcmask 1041408
  %vm46 = vcmask 1042432
  %v47 = vsel %vm45, 4294967295, 65535
  %v48 = vsel %vm46, %v47, 0
  %v50 = vand.u32 %v31, %v48
  %52 = vmatpush.bf16.msra.mxu0 0
  %53 = vmatpush.bf16.msra.mxu0 0
  %54 = vmatpush.bf16.msra.mxu0 0
  %55 = vmatpush.bf16.msra.mxu0 0
  %56 = vmatpush.bf16.msra.mxu0 0
  %57 = vmatpush.bf16.msra.mxu0 0
  %58 = vmatpush.bf16.msra.mxu0 0
  %59 = vmatpush.bf16.msra.mxu0 %v50
  %60 = vmatmul.bf16.gmra.mxu0 %v43
  %v61 = vpop.f32.mrf.mxu0
  %v62 = vadd.f32 %v34, %v61
  %v63 = vpop.f32.mrf.mxu0
  %v64 = vadd.f32 %v34, %v63
  %65 = vdwg.mxu0
  %v66 = vtanh.pop %v62
  %v67 = vtanh.pop %v64
  %v68 = vpack.c.bf16 %v66, %v66
  %v69 = vpack.c.bf16 %v67, %v67
  %v72 = vunpack.c.l.b16 %v68
  %v73 = vunpack.c.l.b16 %v69
  %v74 = vpack.c.b16 %v73, %v72
  %75 = vrot.lane.b32.xlu0 %v74, 5
  %v76 = vpop.permute.xlu0 %75
  %v78 = vsel %vm41, %v40, %v76
  %v79 = vld [vmem:[%s3] sm:$0xf]
  %v80 = vld [vmem:[%s3 + $0x4] sm:$0xf]
  %v81 = vld [vmem:[%s3 + $0x8] sm:$0xf]
  %v82 = vld [vmem:[%s3 + $0xc] sm:$0xf]
  %v83 = vld [vmem:[%s3 + $0x10] sm:$0x7]
  %v84 = vld [vmem:[%s4] sm:$0x1]
  %v86 = vperm.slane %v84, 0
  %v93 = vunpack.c.l.b16 %v79
  %v94 = vunpack.c.l.b16 %v80
  %v95 = vunpack.c.l.b16 %v81
  %v96 = vunpack.c.l.b16 %v82
  %v97 = vunpack.c.l.b16 %v83
  %v98 = vpack.c.b16 %v94, %v93
  %v99 = vpack.c.b16 %v96, %v95
  %v100 = vpack.c.b16 %v97, %v97
  %vm103 = vcmask 302080
  %v104 = vsel %vm103, %v78, 0
  %v107 = vand.u32 %v100, %v48
  %109 = vmatpush.bf16.msra.mxu0 0
  %110 = vmatpush.bf16.msra.mxu0 0
  %111 = vmatpush.bf16.msra.mxu0 0
  %112 = vmatpush.bf16.msra.mxu0 0
  %113 = vmatpush.bf16.msra.mxu0 0
  %114 = vmatpush.bf16.msra.mxu0 %v107
  %115 = vmatpush.bf16.msra.mxu0 %v99
  %116 = vmatpush.bf16.msra.mxu0 %v98
  %117 = vmatmul.bf16.gmra.mxu0 %v104
  %v118 = vpop.f32.mrf.mxu0
  %v119 = vadd.f32 %v86, %v118
  %v120 = vpop.f32.mrf.mxu0
  %v121 = vadd.f32 %v86, %v120
  %122 = vdwg.mxu0
  %v123 = vtanh.pop %v119
  %v124 = vtanh.pop %v121
  %v125 = vpack.c.bf16 %v123, %v123
  %v126 = vpack.c.bf16 %v124, %v124
  %v129 = vunpack.c.l.b16 %v125
  %v130 = vunpack.c.l.b16 %v126
  %v131 = vpack.c.b16 %v130, %v129
  %132 = vrot.lane.b32.xlu0 %v131, 37
  %v133 = vpop.permute.xlu0 %132
  %v135 = vsel %vm103, %v78, %v133
  %v136 = vld [vmem:[%s5] sm:$0xf]
  %v137 = vld [vmem:[%s5 + $0x4] sm:$0xf]
  %v138 = vld [vmem:[%s5 + $0x8] sm:$0xf]
  %v139 = vld [vmem:[%s5 + $0xc] sm:$0xf]
  %v140 = vld [vmem:[%s5 + $0x10] sm:$0xf]
  %v141 = vld [vmem:[%s5 + $0x14] sm:$0xf]
  %v142 = vld [vmem:[%s5 + $0x18] sm:$0xf]
  %v143 = vld [vmem:[%s5 + $0x1c] sm:$0xf]
  %v144 = vld [vmem:[%s5 + $0x20] sm:$0x7]
  %v145 = vld [vmem:[%s6] sm:$0x1]
  %v147 = vperm.slane %v145, 0
  %v158 = vunpack.c.l.b16 %v136
  %v159 = vunpack.c.l.b16 %v137
  %v160 = vunpack.c.l.b16 %v138
  %v161 = vunpack.c.l.b16 %v139
  %v162 = vunpack.c.l.b16 %v140
  %v163 = vunpack.c.l.b16 %v141
  %v164 = vunpack.c.l.b16 %v142
  %v165 = vunpack.c.l.b16 %v143
  %v166 = vunpack.c.l.b16 %v144
  %v167 = vpack.c.b16 %v159, %v158
  %v168 = vpack.c.b16 %v161, %v160
  %v169 = vpack.c.b16 %v163, %v162
  %v170 = vpack.c.b16 %v165, %v164
  %v171 = vpack.c.b16 %v166, %v166
  %vm176 = vcmask 564224
  %v177 = vsel %vm176, %v135, 0
  %v180 = vand.u32 %v171, %v48
  %182 = vmatpush.bf16.msra.mxu0 0
  %183 = vmatpush.bf16.msra.mxu0 0
  %184 = vmatpush.bf16.msra.mxu0 0
  %185 = vmatpush.bf16.msra.mxu0 %v180
  %186 = vmatpush.bf16.msra.mxu0 %v170
  %187 = vmatpush.bf16.msra.mxu0 %v169
  %188 = vmatpush.bf16.msra.mxu0 %v168
  %189 = vmatpush.bf16.msra.mxu0 %v167
  %190 = vmatmul.bf16.gmra.mxu0 %v177
  %v191 = vpop.f32.mrf.mxu0
  %v192 = vadd.f32 %v147, %v191
  %v193 = vpop.f32.mrf.mxu0
  %v194 = vadd.f32 %v147, %v193
  %195 = vdwg.mxu0
  %196 = vst [vmem:[%s7] sm:$0xff] %v192
  %197 = vst [vmem:[%s7 + $0x8] sm:$0xff] %v194
  // Predicated region
  $region30: #{a_call__.1} parent=0 // pred_check
    _
  $region31: #{a_call__.1} parent=0 // pred_check_branch
    %199 = sbr.rel (0) target = $region33
  $region32: #{a_call__.1} parent=0 // pred_region
    _
  $region33: #{a_call__.1} parent=0 // pred_fallthru
    _
  // Predicated region
  $region34: #{a_call__.1} parent=0 // pred_check
    _
  $region35: #{a_call__.1} parent=0 // pred_check_branch
    %201 = sbr.rel (0) target = $region37
  $region36: #{a_call__.1} parent=0 // pred_region
    _
  $region37: #{a_call__.1} parent=0 // pred_fallthru
    _

</llo_original>
